<compile_context>
chip_gen: v6e
topology: v6e:2x2x1
jax: 0.10.0
libtpu: 0.0.40
codegen_flags: <defaults>
</compile_context>

<pallas_src>
import jax
import jax.numpy as jnp
from jax.experimental import pallas as pl
from jax.experimental.pallas import tpu as pltpu

# RbfKernelBank constants from the module (gradkernels only toggles requires_grad)
MUS = [-0.9, -0.7, -0.5, -0.3, -0.1, 0.1, 0.3, 0.5, 0.7, 0.9, 1.0]
SIGMAS = [0.1, 0.1, 0.1, 0.1, 0.1, 0.1, 0.1, 0.1, 0.1, 0.1, 0.001]
NUM_KERNELS = len(MUS)


def _chip_budget():
    """(vmem_limit_bytes, max_batch_tile) derived from the actual chip generation."""
    cap = 64 * 1024 * 1024
    try:
        cap = int(getattr(pltpu.get_tpu_info(), "vmem_capacity_bytes", cap))
    except Exception:
        pass
    # Never request the full physical VMEM (v7x has only 64 MiB/TC); leave headroom
    # for double-buffering and compiler scratch.
    vmem_limit = min(cap * 3 // 4, 100 * 1024 * 1024)   # ~48 MiB on v7x, ~96 MiB on v5e/v6e
    max_tb = 8 if cap <= 64 * 1024 * 1024 else 16       # bound the wide conv temp on v7x
    return vmem_limit, max_tb


_VMEM_LIMIT, _MAX_TB = _chip_budget()


def _batch_tile(batch):
    """Batch tile that satisfies the (8,128) BlockSpec rule for [TB, L]-style blocks."""
    for t in (_MAX_TB, 16, 8):
        if t <= batch and batch % t == 0 and t % 8 == 0:
            return t
    return batch   # small / odd batches: single tile (correct, just less pipelining)


# ------------------------------------------------------------------ Conv1d ---
def _make_conv_kernel(n_taps, out_len, filters):
    def kernel(x_ref, w_ref, b_ref, keep_ref, o_ref):
        # x_ref:    [TB, Lpad, E]      bf16, right-zero-padded embeddings
        # w_ref:    [1, E, n_taps*F]   bf16, all taps packed along the lane axis (col = dt*F+f)
        # b_ref:    [1, 1, F]          f32
        # keep_ref: [TB, L]            f32, 1.0 where token != pad else 0.0
        # o_ref:    [1, TB, L, F]      bf16, cosine-normalized + pad-masked conv rep
        tb, lpad, e = x_ref.shape
        x2 = x_ref[...].reshape(tb * lpad, e)
        # single 2-D MXU matmul (bf16 inputs, f32 accumulation)
        y = jnp.dot(x2, w_ref[0], preferred_element_type=jnp.float32)
        y = y.reshape(tb, lpad, n_taps * filters)
        acc = y[:, 0:out_len, 0:filters]
        for dt in range(1, n_taps):                      # tap shift-add on F-wide outputs
            acc = acc + y[:, dt:dt + out_len, dt * filters:(dt + 1) * filters]
        conv = acc + b_ref[...]
        # cosine pre-normalization + pad-row zeroing (simmat becomes a plain matmul later)
        norm = jnp.sqrt(jnp.sum(conv * conv, axis=-1, keepdims=True))
        scale = keep_ref[...][:, :, None] * pl.reciprocal(norm + 1e-9, approx=True)
        o_ref[0] = (conv * scale).astype(o_ref.dtype)    # exact zeros survive the bf16 cast
    return kernel


def conv_views_normalized(x_emb, tokens, w_stack, b_stack, pad_token, maxngram, filters):
    """x_emb [B, L, E]; tokens [B, L] int; returns normalized+masked bf16 reps [Vn, B, L, F]."""
    B, L, E = x_emb.shape
    Vn = maxngram
    Lpad = L + maxngram - 1
    # nn.ConstantPad1d((0, n-1), 0): pad once to the widest n-gram; zero taps handle the rest.
    x_pad = jnp.pad(x_emb.astype(jnp.bfloat16), ((0, 0), (0, maxngram - 1), (0, 0)))
    keep = (tokens != pad_token).astype(jnp.float32)     # [B, L] (lane-dense mask)
    TB = _batch_tile(B)
    nbt = B // TB
    cost = pl.CostEstimate(
        flops=int(2 * Vn * B * Lpad * E * maxngram * filters),
        transcendentals=int(Vn * B * L),
        bytes_accessed=int(2 * (B * Lpad * E + Vn * E * maxngram * filters
                                + Vn * B * L * filters) + 4 * (Vn * filters + B * L)),
    )
    return pl.pallas_call(
        _make_conv_kernel(maxngram, L, filters),
        out_shape=jax.ShapeDtypeStruct((Vn, B, L, filters), jnp.bfloat16),
        grid_spec=pltpu.PrefetchScalarGridSpec(
            num_scalar_prefetch=0,
            # view axis innermost -> the big embedding slab is DMA'd once per batch tile
            grid=(nbt, Vn),
            in_specs=[
                pl.BlockSpec((TB, Lpad, E), lambda i, v: (i, 0, 0)),
                pl.BlockSpec((1, E, maxngram * filters), lambda i, v: (v, 0, 0)),
                pl.BlockSpec((1, 1, filters), lambda i, v: (v, 0, 0)),
                pl.BlockSpec((TB, L), lambda i, v: (i, 0)),
            ],
            out_specs=pl.BlockSpec((1, TB, L, filters), lambda i, v: (v, i, 0, 0)),
        ),
        compiler_params=pltpu.CompilerParams(
            dimension_semantics=("parallel", "arbitrary"),
            vmem_limit_bytes=_VMEM_LIMIT),
        cost_estimate=cost,
    )(x_pad, w_stack, b_stack, keep)


def _pack_conv_weights(conv_w, conv_b, maxngram, filters, emb_dim):
    """Pack per-ngram Conv1d weights [F, E, n] (PyTorch layout) into a per-view single-matmul
    bf16 RHS: w_stack [Vn, E, maxngram*F] with column index dt*F + f (taps >= n zero-padded),
    and f32 b_stack [Vn, 1, F]."""
    ws = []
    for v, w in enumerate(conv_w):
        n = v + 1
        wt = jnp.transpose(w, (2, 1, 0))                              # [n, E, F]
        if maxngram > n:
            wt = jnp.concatenate(
                [wt, jnp.zeros((maxngram - n, emb_dim, filters), jnp.float32)], axis=0)
        ws.append(jnp.transpose(wt, (1, 0, 2)).reshape(emb_dim, maxngram * filters))
    w_stack = jnp.stack(ws, axis=0).astype(jnp.bfloat16)              # [Vn, E, N*F] bf16
    b_stack = jnp.stack([b.reshape(1, filters) for b in conv_b], axis=0).astype(jnp.float32)
    return w_stack, b_stack


# ----------------------------------- simmat + RBF pooling + combine (fused) --
def _make_simfeat_combine_kernel(singlefc, scoretanh):
    def view_contrib(a, b, wr):
        # a: [TB, Q, F] bf16   b: [TB, D, F] bf16 (cosine-normalized + pad-masked)  wr: [K, H]
        sim = jnp.einsum("bqf,bdf->bqd", a, b, preferred_element_type=jnp.float32)
        qmask = jnp.sum(sim, axis=2) != 0.0                           # mask = sum(DLEN) != 0
        contrib = None
        for k, (mu, sigma) in enumerate(zip(MUS, SIGMAS)):
            adj = sim - mu
            kv = jnp.exp(adj * adj * (-0.5 / (sigma * sigma)))        # RBF kernel k
            r = jnp.sum(kv, axis=2)                                   # sum over DLEN   [TB, Q]
            r = jnp.where(qmask, jnp.log(r + 1e-6), 0.0)              # masked log
            feat_k = jnp.sum(r, axis=1, keepdims=True)                # sum over QLEN   [TB, 1]
            c = feat_k * wr[k:k + 1, :]                               # weighted by FC1 [TB, H]
            contrib = c if contrib is None else contrib + c
        return contrib

    if singlefc:
        def kernel(a_ref, b_ref, wr_ref, b1_ref, o_ref, acc_ref):
            p = pl.program_id(1)

            @pl.when(p == 0)
            def _():
                acc_ref[...] = jnp.zeros_like(acc_ref)

            acc_ref[...] += view_contrib(a_ref[0], b_ref[0], wr_ref[0])

            @pl.when(p == pl.num_programs(1) - 1)
            def _():
                out = acc_ref[...] + b1_ref[...]
                if scoretanh:
                    out = jnp.tanh(out)
                o_ref[...] = out
    else:
        def kernel(a_ref, b_ref, wr_ref, b1_ref, w2_ref, b2_ref, o_ref, acc_ref):
            p = pl.program_id(1)

            @pl.when(p == 0)
            def _():
                acc_ref[...] = jnp.zeros_like(acc_ref)

            acc_ref[...] += view_contrib(a_ref[0], b_ref[0], wr_ref[0])

            @pl.when(p == pl.num_programs(1) - 1)
            def _():
                h = jnp.tanh(acc_ref[...] + b1_ref[...])
                out = jnp.dot(h, w2_ref[...],
                              preferred_element_type=jnp.float32) + b2_ref[...]
                if scoretanh:
                    out = jnp.tanh(out)
                o_ref[...] = out
    return kernel


def simfeat_combine(a_reps, b_reps, combine_params, crossmatch, singlefc, scoretanh):
    """a_reps [Vn, B, Q, F] bf16, b_reps [Vn, B, D, F] bf16 -> scores [B, 1] f32."""
    Vn, B, Q, F = a_reps.shape
    D = b_reps.shape[2]
    V2 = Vn * Vn if crossmatch else Vn
    K = NUM_KERNELS
    if singlefc:
        w1, b1 = combine_params
    else:
        w1, b1, w2, b2 = combine_params
    H = w1.shape[0]
    # Reference combine consumes features flattened kernel-major (index = k*V2 + v):
    #   Wr[v, k, h] = W1[h, k*V2 + v]
    wr = jnp.transpose(w1.reshape(H, K, V2), (2, 1, 0)).astype(jnp.float32)   # [V2, K, H]
    b1k = b1.reshape(1, H).astype(jnp.float32)

    TB = _batch_tile(B)
    nbt = B // TB

    if crossmatch:
        # Pair order p = vb*Vn + va: the big doc-rep block index (p // Vn) is slow-varying,
        # so Pallas revisit-reuse fetches each doc view only once per batch tile; the small
        # query-rep block cycles fast.  Permute the FC1 weights to match (summation order
        # of the accumulator is irrelevant).
        a_map = lambda i, p: (p % Vn, i, 0, 0)
        b_map = lambda i, p: (p // Vn, i, 0, 0)
        wr = jnp.transpose(wr.reshape(Vn, Vn, K, H), (1, 0, 2, 3)).reshape(V2, K, H)
    else:
        a_map = lambda i, p: (p, i, 0, 0)
        b_map = lambda i, p: (p, i, 0, 0)

    in_specs = [
        pl.BlockSpec((1, TB, Q, F), a_map),
        pl.BlockSpec((1, TB, D, F), b_map),
        pl.BlockSpec((1, K, H), lambda i, p: (p, 0, 0)),
        pl.BlockSpec((1, H), lambda i, p: (0, 0)),
    ]
    args = [a_reps, b_reps, wr, b1k]
    if not singlefc:
        in_specs += [
            pl.BlockSpec((H, 1), lambda i, p: (0, 0)),
            pl.BlockSpec((1, 1), lambda i, p: (0, 0)),
        ]
        args += [w2.T.astype(jnp.float32).reshape(H, 1),
                 b2.astype(jnp.float32).reshape(1, 1)]

    cost = pl.CostEstimate(
        flops=int(V2 * B * Q * D * (2 * F + 6 * K)),
        transcendentals=int(V2 * B * Q * (D + 1) * K),
        bytes_accessed=int(2 * (Vn * B * D * F + V2 * B * Q * F) + 4 * (V2 * K * H + B)),
    )
    return pl.pallas_call(
        _make_simfeat_combine_kernel(singlefc, scoretanh),
        out_shape=jax.ShapeDtypeStruct((B, 1), jnp.float32),
        grid_spec=pltpu.PrefetchScalarGridSpec(
            num_scalar_prefetch=0,
            grid=(nbt, V2),                         # reduction (view pairs) axis last
            in_specs=in_specs,
            out_specs=pl.BlockSpec((TB, 1), lambda i, p: (i, 0)),
            scratch_shapes=[pltpu.VMEM((TB, H), jnp.float32)],
        ),
        compiler_params=pltpu.CompilerParams(
            dimension_semantics=("parallel", "arbitrary"),
            vmem_limit_bytes=_VMEM_LIMIT),
        cost_estimate=cost,
    )(*args)


# ------------------------------------------------------------- full module ---
class ConvKNRMPallas:
    def __init__(self, embeddings, config, key):
        self.p = dict(config)
        self.embeddings = jnp.asarray(embeddings, jnp.float32)        # [vocab, E]
        self.pad_token = config["pad_token"]
        E = self.embeddings.shape[1]
        F = config["filters"]
        maxngram = config["maxngram"]
        self.maxngram = maxngram
        self.filters = F
        self.channels = maxngram ** 2 if config["crossmatch"] else maxngram
        keys = jax.random.split(key, 2 * maxngram + 4)
        # Conv1d weights: PyTorch layout [filters, in_channels, kernel_size]
        conv_w, conv_b = [], []
        for i, n in enumerate(range(1, maxngram + 1)):
            conv_w.append(0.1 * jax.random.normal(keys[2 * i], (F, E, n), jnp.float32))
            conv_b.append(0.1 * jax.random.normal(keys[2 * i + 1], (F,), jnp.float32))
        self.conv_w_stack, self.conv_b_stack = _pack_conv_weights(conv_w, conv_b, maxngram, F, E)
        fdim = NUM_KERNELS * self.channels
        if config["singlefc"]:
            w1 = 0.1 * jax.random.normal(keys[-4], (1, fdim), jnp.float32)
            b1 = 0.1 * jax.random.normal(keys[-3], (1,), jnp.float32)
            self.combine_params = (w1, b1)
        else:
            w1 = 0.1 * jax.random.normal(keys[-4], (30, fdim), jnp.float32)
            b1 = 0.1 * jax.random.normal(keys[-3], (30,), jnp.float32)
            w2 = 0.1 * jax.random.normal(keys[-2], (1, 30), jnp.float32)
            b2 = 0.1 * jax.random.normal(keys[-1], (1,), jnp.float32)
            self.combine_params = (w1, b1, w2, b2)

    def __call__(self, sentence, query_sentence, query_idf):
        # query_idf is an argument of the PyTorch forward but is unused there too.
        del query_idf
        a_emb = jnp.take(self.embeddings, query_sentence, axis=0)      # [B, Q, E] (glue gather)
        b_emb = jnp.take(self.embeddings, sentence, axis=0)            # [B, D, E]
        a_reps = conv_views_normalized(a_emb, query_sentence, self.conv_w_stack,
                                       self.conv_b_stack, self.pad_token,
                                       self.maxngram, self.filters)    # [Vn, B, Q, F] bf16
        b_reps = conv_views_normalized(b_emb, sentence, self.conv_w_stack,
                                       self.conv_b_stack, self.pad_token,
                                       self.maxngram, self.filters)    # [Vn, B, D, F] bf16
        return simfeat_combine(a_reps, b_reps, self.combine_params,
                               self.p["crossmatch"], self.p["singlefc"],
                               self.p["scoretanh"])                    # [B, 1]


if __name__ == "__main__":
    config = {
        "pad_token": 0,
        "gradkernels": True,
        "maxngram": 2,
        "filters": 16,
        "crossmatch": True,
        "singlefc": True,
        "scoretanh": False,
    }
    B, QLEN, DLEN, VOCAB, EMB = 2, 8, 16, 50, 32

    key = jax.random.PRNGKey(0)
    k_emb, k_params, k_q, k_d, k_idf = jax.random.split(key, 5)
    embeddings = 0.5 * jax.random.normal(k_emb, (VOCAB, EMB), jnp.float32)

    model = ConvKNRMPallas(embeddings, config, k_params)

    query_sentence = jax.random.randint(k_q, (B, QLEN), 1, VOCAB, dtype=jnp.int32)
    sentence = jax.random.randint(k_d, (B, DLEN), 1, VOCAB, dtype=jnp.int32)
    # introduce some padding positions to exercise the padding mask
    query_sentence = query_sentence.at[:, -2:].set(config["pad_token"])
    sentence = sentence.at[:, -5:].set(config["pad_token"])
    query_idf = jax.random.uniform(k_idf, (B, QLEN), jnp.float32)

    scores = model(sentence, query_sentence, query_idf)
    scores = jax.block_until_ready(scores)
    assert scores.shape == (B, 1)
    assert bool(jnp.all(jnp.isfinite(scores)))
    print("KERNEL_OK")
</pallas_src>

<mosaic_0001>
module attributes {stable_mosaic.version = 11 : i64} {
  func.func @kernel(%arg0: i32, %arg1: i32, %arg2: memref<2x9x32xbf16, #tpu.memory_space<vmem>>, %arg3: memref<1x32x32xbf16, #tpu.memory_space<vmem>>, %arg4: memref<1x1x16xf32, #tpu.memory_space<vmem>>, %arg5: memref<2x8xf32, #tpu.memory_space<vmem>>, %arg6: memref<1x2x8x16xbf16, #tpu.memory_space<vmem>>) attributes {dimension_semantics = [#tpu.dimension_semantics<parallel>, #tpu.dimension_semantics<arbitrary>], iteration_bounds = array<i64: 1, 2>, scalar_prefetch = 0 : i64, scratch_operands = 0 : i64, tpu.core_type = #tpu.core_type<tc>, window_params = [{transform_indices = @transform_0, window_bounds = array<i64: 2, 9, 32>}, {transform_indices = @transform_1, window_bounds = array<i64: 1, 32, 32>}, {transform_indices = @transform_2, window_bounds = array<i64: 1, 1, 16>}, {transform_indices = @transform_3, window_bounds = array<i64: 2, 8>}, {transform_indices = @transform_4, window_bounds = array<i64: 1, 2, 8, 16>}]} {
    %c0 = arith.constant 0 : index
    %c0_0 = arith.constant 0 : index
    %c0_1 = arith.constant 0 : index
    %0 = vector.load %arg2[%c0, %c0_0, %c0_1] : memref<2x9x32xbf16, #tpu.memory_space<vmem>>, vector<2x9x32xbf16>
    %1 = vector.shape_cast %0 : vector<2x9x32xbf16> to vector<18x32xbf16>
    %c0_2 = arith.constant 0 : index
    %c0_3 = arith.constant 0 : index
    %c0_4 = arith.constant 0 : index
    %2 = vector.load %arg3[%c0_2, %c0_3, %c0_4] : memref<1x32x32xbf16, #tpu.memory_space<vmem>>, vector<1x32x32xbf16>
    %3 = vector.shape_cast %2 : vector<1x32x32xbf16> to vector<32x32xbf16>
    %cst = arith.constant dense<0.000000e+00> : vector<18x32xf32>
    %4 = tpu.matmul %1, %3, %cst {dimension_numbers = #tpu.dot_dimension_numbers<[1], [0], [0], [1], [0, 0, 1, 1], [], []>} : vector<18x32xbf16>, vector<32x32xbf16>, vector<18x32xf32> -> vector<18x32xf32>
    %5 = vector.shape_cast %4 : vector<18x32xf32> to vector<2x9x32xf32>
    %6 = vector.extract_strided_slice %5 {offsets = [0, 0, 0], sizes = [2, 8, 16], strides = [1, 1, 1]} : vector<2x9x32xf32> to vector<2x8x16xf32>
    %7 = vector.extract_strided_slice %5 {offsets = [0, 1, 16], sizes = [2, 8, 16], strides = [1, 1, 1]} : vector<2x9x32xf32> to vector<2x8x16xf32>
    %8 = arith.addf %6, %7 : vector<2x8x16xf32>
    %c0_5 = arith.constant 0 : index
    %c0_6 = arith.constant 0 : index
    %c0_7 = arith.constant 0 : index
    %9 = vector.load %arg4[%c0_5, %c0_6, %c0_7] : memref<1x1x16xf32, #tpu.memory_space<vmem>>, vector<1x1x16xf32>
    %10 = vector.broadcast %9 : vector<1x1x16xf32> to vector<2x8x16xf32>
    %11 = arith.addf %8, %10 : vector<2x8x16xf32>
    %12 = arith.mulf %11, %11 : vector<2x8x16xf32>
    %cst_8 = arith.constant dense<0.000000e+00> : vector<2x8xf32>
    %13 = vector.multi_reduction <add>, %12, %cst_8 [2] : vector<2x8x16xf32> to vector<2x8xf32>
    %14 = vector.shape_cast %13 : vector<2x8xf32> to vector<2x8x1xf32>
    %15 = math.sqrt %14 : vector<2x8x1xf32>
    %c0_9 = arith.constant 0 : index
    %c0_10 = arith.constant 0 : index
    %16 = vector.load %arg5[%c0_9, %c0_10] : memref<2x8xf32, #tpu.memory_space<vmem>>, vector<2x8xf32>
    %17 = vector.shape_cast %16 : vector<2x8xf32> to vector<2x8x1xf32>
    %cst_11 = arith.constant 9.99999971E-10 : f32
    %18 = vector.broadcast %cst_11 : f32 to vector<2x8x1xf32>
    %19 = arith.addf %15, %18 : vector<2x8x1xf32>
    %20 = tpu.reciprocal %19 {approx = true} : vector<2x8x1xf32> -> vector<2x8x1xf32>
    %21 = arith.mulf %17, %20 : vector<2x8x1xf32>
    %22 = vector.broadcast %21 : vector<2x8x1xf32> to vector<2x8x16xf32>
    %23 = arith.mulf %11, %22 : vector<2x8x16xf32>
    %24 = arith.truncf %23 : vector<2x8x16xf32> to vector<2x8x16xbf16>
    %c0_12 = arith.constant 0 : index
    %c0_13 = arith.constant 0 : index
    %c0_14 = arith.constant 0 : index
    %c0_15 = arith.constant 0 : index
    %25 = vector.load %arg6[%c0_12, %c0_13, %c0_14, %c0_15] : memref<1x2x8x16xbf16, #tpu.memory_space<vmem>>, vector<1x2x8x16xbf16>
    %26 = vector.shape_cast %25 : vector<1x2x8x16xbf16> to vector<2x8x16xbf16>
    %27 = vector.shape_cast %24 : vector<2x8x16xbf16> to vector<1x2x8x16xbf16>
    tpu.vector_store %arg6[%c0_12, %c0_13, %c0_14, %c0_15], %27 {strides = array<i32>} : memref<1x2x8x16xbf16, #tpu.memory_space<vmem>>, vector<1x2x8x16xbf16>,
    return
  }
  func.func @transform_0(%arg0: i32, %arg1: i32) -> (i32, i32, i32) {
    %c0_i32 = arith.constant 0 : i32
    %c0_i32_0 = arith.constant 0 : i32
    %c0_i32_1 = arith.constant 0 : i32
    return %arg0, %c0_i32, %c0_i32_0 : i32, i32, i32
  }
  func.func @transform_1(%arg0: i32, %arg1: i32) -> (i32, i32, i32) {
    %c0_i32 = arith.constant 0 : i32
    %c0_i32_0 = arith.constant 0 : i32
    %c0_i32_1 = arith.constant 0 : i32
    return %arg1, %c0_i32, %c0_i32_0 : i32, i32, i32
  }
  func.func @transform_2(%arg0: i32, %arg1: i32) -> (i32, i32, i32) {
    %c0_i32 = arith.constant 0 : i32
    %c0_i32_0 = arith.constant 0 : i32
    %c0_i32_1 = arith.constant 0 : i32
    return %arg1, %c0_i32, %c0_i32_0 : i32, i32, i32
  }
  func.func @transform_3(%arg0: i32, %arg1: i32) -> (i32, i32) {
    %c0_i32 = arith.constant 0 : i32
    %c0_i32_0 = arith.constant 0 : i32
    return %arg0, %c0_i32 : i32, i32
  }
  func.func @transform_4(%arg0: i32, %arg1: i32) -> (i32, i32, i32, i32) {
    %c0_i32 = arith.constant 0 : i32
    %c0_i32_0 = arith.constant 0 : i32
    %c0_i32_1 = arith.constant 0 : i32
    return %arg1, %arg0, %c0_i32, %c0_i32_0 : i32, i32, i32, i32
  }
}

</mosaic_0001>

<llo_original>
// kernel: tpu_custom_call.1
$region0: #{tpu_custom_call.1}
  #allocation0 [shape = 'u32[]', space=smem, size = 0x4, offset = 0x4, fixed_abs, tag = 'smem constant byte address 0x4 - core index']
  #allocation1 [shape = 'u32[144,128]{1,0:T(1,128)}', space=vmem, size = 0x12000, scoped, tag = 'internal scratch']
  %s0 = inlined_call_operand.vmem [shape: bf16[2,9,32], index: 0, kind: input, shape index: {}]
  %s1 = inlined_call_operand.hbm [shape: bf16[2,32,32], index: 1, kind: input, shape index: {}]
  %s2 = inlined_call_operand.vmem [shape: f32[2,1,16], index: 2, kind: input, shape index: {}]
  %s3 = inlined_call_operand.vmem [shape: f32[2,8], index: 3, kind: input, shape index: {}]
  %s4 = inlined_call_operand.hbm [shape: bf16[2,2,8,16], index: 4, kind: output, shape index: {}]
  %s5 = sld [smem:[#allocation0]]
  $region53: #{tpu_custom_call.1} parent=0
    _
  %s7 = ssub.s32 1, %s5
  %s8 = scalar_select 0, %s7, %s5
  $region1: #{tpu_custom_call.1} parent=0
    #allocation2 [shape = 'u8[16384]{0}', space=vmem, size = 0x4000, scoped, tag = 'input window, operand 1']
    #allocation3 [shape = 's32[2]{0}', space=sflag, size = 0x8, scoped, tag = 'scoped memory for tpu_custom_call.1']
    #allocation4 [shape = 's32[2]{0}', space=sflag, size = 0x8, scoped, tag = 'scoped memory for tpu_custom_call.1']
    #allocation5 [shape = 'u8[8192]{0}', space=vmem, size = 0x2000, scoped, tag = 'output window, operand 0']
    %9 = vsyncpa [#allocation3], 0
    %s10 = scalar_lea.sflag [#allocation3], 1
    %11 = vsyncpa %s10, 0
    %12 = vsyncpa [#allocation4], 0
    %s13 = scalar_lea.sflag [#allocation4], 1
    %14 = vsyncpa %s13, 0
    loop: start=0, step=1, limit=4
    $region2: #{tpu_custom_call.1} parent=1 // loop_pre_header
      _
    $region3: #{tpu_custom_call.1} parent=1 // loop_header
      %s16 = sphi 0, %s20
      %p17 = scmp.ge.s32.totalorder %s16, 4
      %s23 = sphi 0, %s35
      %s24 = sphi 0, %s31
      %s25 = sphi 0, %s23
      %s26 = sphi 0, %s24
      %s27 = sphi 0, %s25
      %s28 = sphi 0, %s26
      %s38 = sphi 0, %s40
      %s41 = sphi 0, %s38
      %s42 = sphi 0, %s41
      %s58 = sphi 0, %s42
      %s64 = sphi 0, %s66
      %s67 = sphi 0, %s64
      %s68 = sphi 0, %s67
      %s84 = sphi 0, %s68
      %s90 = sphi 0, %s92
      %s93 = sphi 0, %s90
      %s94 = sphi 0, %s93
      %s110 = sphi 0, %s94
      %s116 = sphi 0, %s118
      %s119 = sphi 0, %s116
      %s120 = sphi 0, %s119
      %s136 = sphi 0, %s120
      %s144 = sphi 0, %s146
      %s147 = sphi 0, %s144
      %s148 = sphi 0, %s147
      %s164 = sphi 0, %s148
    $region4: #{tpu_custom_call.1} parent=1 // loop_header_branch
      %19 = sbr.rel (%p17) target = $region8
    $region5: #{tpu_custom_call.1} parent=1 // loop_body
      %s21 = ssub.s32 %s16, 1
      %s22 = ssub.s32 %s16, 2
      %s29 = sadd.s32 1, %s24
      %p30 = scmp.ge.s32.totalorder %s29, 2
      %s31 = scalar_select %p30, 0, %s29
      %s32 = sadd.s32 1, %s23
      %s33 = scalar_select %p30, %s32, %s23
      %p34 = scmp.ge.s32.totalorder %s33, 1
      %s35 = scalar_select %p34, 0, %s33
      %s36 = ssub.s32 %s23, %s35
      %p37 = scmp.eq.s32.totalorder %s36, 0
      %s39 = sadd.s32 %s38, 1
      %s40 = scalar_select %p37, %s38, %s39
      %p43 = pneg %p37
      %p44 = scmp.eq.s32.totalorder %s16, 1
      %p45 = por %p43, %p44
      %p46 = scmp.ne.s32.totalorder %s38, %s41
      %p47 = scmp.eq.s32.totalorder %s16, 0
      %p48 = por %p46, %p47
      %p49 = scmp.ne.s32.totalorder %s38, %s41
      %p50 = scmp.eq.s32.totalorder %s21, 1
      %p51 = por %p49, %p50
      %p52 = scmp.ne.s32.totalorder %s41, %s42
      %p53 = scmp.eq.s32.totalorder %s21, 0
      %p54 = por %p52, %p53
      %p55 = scmp.ne.s32.totalorder %s41, %s42
      %p56 = scmp.eq.s32.totalorder %s22, 1
      %p57 = por %p55, %p56
      %p59 = scmp.ne.s32.totalorder %s42, %s58
      %p60 = scmp.eq.s32.totalorder %s22, 0
      %p61 = por %p59, %p60
      %s62 = ssub.s32 %s24, %s31
      %p63 = scmp.eq.s32.totalorder %s62, 0
      %s65 = sadd.s32 %s64, 1
      %s66 = scalar_select %p63, %s64, %s65
      %p69 = pneg %p63
      %p70 = scmp.eq.s32.totalorder %s16, 1
      %p71 = por %p69, %p70
      %p72 = scmp.ne.s32.totalorder %s64, %s67
      %p73 = scmp.eq.s32.totalorder %s16, 0
      %p74 = por %p72, %p73
      %p75 = scmp.ne.s32.totalorder %s64, %s67
      %p76 = scmp.eq.s32.totalorder %s21, 1
      %p77 = por %p75, %p76
      %p78 = scmp.ne.s32.totalorder %s67, %s68
      %p79 = scmp.eq.s32.totalorder %s21, 0
      %p80 = por %p78, %p79
      %p81 = scmp.ne.s32.totalorder %s67, %s68
      %p82 = scmp.eq.s32.totalorder %s22, 1
      %p83 = por %p81, %p82
      %p85 = scmp.ne.s32.totalorder %s68, %s84
      %p86 = scmp.eq.s32.totalorder %s22, 0
      %p87 = por %p85, %p86
      %s88 = ssub.s32 %s24, %s31
      %p89 = scmp.eq.s32.totalorder %s88, 0
      %s91 = sadd.s32 %s90, 1
      %s92 = scalar_select %p89, %s90, %s91
      %p95 = pneg %p89
      %p96 = scmp.eq.s32.totalorder %s16, 1
      %p97 = por %p95, %p96
      %p98 = scmp.ne.s32.totalorder %s90, %s93
      %p99 = scmp.eq.s32.totalorder %s16, 0
      %p100 = por %p98, %p99
      %p101 = scmp.ne.s32.totalorder %s90, %s93
      %p102 = scmp.eq.s32.totalorder %s21, 1
      %p103 = por %p101, %p102
      %p104 = scmp.ne.s32.totalorder %s93, %s94
      %p105 = scmp.eq.s32.totalorder %s21, 0
      %p106 = por %p104, %p105
      %p107 = scmp.ne.s32.totalorder %s93, %s94
      %p108 = scmp.eq.s32.totalorder %s22, 1
      %p109 = por %p107, %p108
      %p111 = scmp.ne.s32.totalorder %s94, %s110
      %p112 = scmp.eq.s32.totalorder %s22, 0
      %p113 = por %p111, %p112
      %s114 = ssub.s32 %s23, %s35
      %p115 = scmp.eq.s32.totalorder %s114, 0
      %s117 = sadd.s32 %s116, 1
      %s118 = scalar_select %p115, %s116, %s117
      %p121 = pneg %p115
      %p122 = scmp.eq.s32.totalorder %s16, 1
      %p123 = por %p121, %p122
      %p124 = scmp.ne.s32.totalorder %s116, %s119
      %p125 = scmp.eq.s32.totalorder %s16, 0
      %p126 = por %p124, %p125
      %p127 = scmp.ne.s32.totalorder %s116, %s119
      %p128 = scmp.eq.s32.totalorder %s21, 1
      %p129 = por %p127, %p128
      %p130 = scmp.ne.s32.totalorder %s119, %s120
      %p131 = scmp.eq.s32.totalorder %s21, 0
      %p132 = por %p130, %p131
      %p133 = scmp.ne.s32.totalorder %s119, %s120
      %p134 = scmp.eq.s32.totalorder %s22, 1
      %p135 = por %p133, %p134
      %p137 = scmp.ne.s32.totalorder %s120, %s136
      %p138 = scmp.eq.s32.totalorder %s22, 0
      %p139 = por %p137, %p138
      %s140 = ssub.s32 %s24, %s31
      %s141 = ssub.s32 %s23, %s35
      %s142 = sor.u32 %s140, %s141
      %p143 = scmp.eq.s32.totalorder %s142, 0
      %s145 = sadd.s32 %s144, 1
      %s146 = scalar_select %p143, %s144, %s145
      %p149 = pneg %p143
      %p150 = scmp.eq.s32.totalorder %s16, 1
      %p151 = por %p149, %p150
      %p152 = scmp.ne.s32.totalorder %s144, %s147
      %p153 = scmp.eq.s32.totalorder %s16, 0
      %p154 = por %p152, %p153
      %p155 = scmp.ne.s32.totalorder %s144, %s147
      %p156 = scmp.eq.s32.totalorder %s21, 1
      %p157 = por %p155, %p156
      %p158 = scmp.ne.s32.totalorder %s147, %s148
      %p159 = scmp.eq.s32.totalorder %s21, 0
      %p160 = por %p158, %p159
      %p161 = scmp.ne.s32.totalorder %s147, %s148
      %p162 = scmp.eq.s32.totalorder %s22, 1
      %p163 = por %p161, %p162
      %p165 = scmp.ne.s32.totalorder %s148, %s164
      %p166 = scmp.eq.s32.totalorder %s22, 0
      %p167 = por %p165, %p166
      %p168 = scmp.le.s32.totalorder 1, %s16
      %p169 = scmp.lt.s32.totalorder %s16, 3
      %p170 = pnand %p168, %p169
      %p171 = pneg %p170
      // Predicated region
      $region9: #{tpu_custom_call.1} parent=5 // pred_check
        _
      $region10: #{tpu_custom_call.1} parent=5 // pred_check_branch
        %173 = sbr.rel (%p170) target = $region12
      $region11: #{tpu_custom_call.1} parent=5 // pred_region
        %s174 = ssub.s32 %s16, 1
        // Predicated region
        $region13: #{tpu_custom_call.1} parent=11 // pred_check
          %p175 = pneg %p54
        $region14: #{tpu_custom_call.1} parent=11 // pred_check_branch
          %177 = sbr.rel (%p175) target = $region16
        $region15: #{tpu_custom_call.1} parent=11 // pred_region
          %s178 = smul.u32 2, %s25
          %p179 = scmp.lt.s32.totalorder %s178, 1
          %s180 = scalar_select %p179, %s178, 1
          %s181 = smul.addr %s180, 2
          %s182 = smul.addr %s181, 4
          %s183 = scalar_lea.vmem %s0, %s182
          %s184 = smul.u32 2, %s25
        $region16: #{tpu_custom_call.1} parent=11 // pred_fallthru
          _
        // Predicated region
        $region17: #{tpu_custom_call.1} parent=11 // pred_check
          %p185 = pneg %p132
        $region18: #{tpu_custom_call.1} parent=11 // pred_check_branch
          %187 = sbr.rel (%p185) target = $region20
        $region19: #{tpu_custom_call.1} parent=11 // pred_region
          %p188 = scmp.lt.s32.totalorder %s25, 0
          %s189 = scalar_select %p188, %s25, 0
          %s190 = smul.addr %s189, 2
          %s191 = scalar_lea.vmem %s3, %s190
        $region20: #{tpu_custom_call.1} parent=11 // pred_fallthru
          _
      $region12: #{tpu_custom_call.1} parent=5 // pred_fallthru
        _
      %p192 = scmp.lt.s32.totalorder %s16, 2
      // Predicated region
      $region21: #{tpu_custom_call.1} parent=5 // pred_check
        %p193 = pneg %p192
      $region22: #{tpu_custom_call.1} parent=5 // pred_check_branch
        %195 = sbr.rel (%p193) target = $region24
      $region23: #{tpu_custom_call.1} parent=5 // pred_region
        // Predicated region
        $region25: #{tpu_custom_call.1} parent=23 // pred_check
          %p196 = pneg %p74
        $region26: #{tpu_custom_call.1} parent=23 // pred_check_branch
          %198 = sbr.rel (%p196) target = $region28
        $region27: #{tpu_custom_call.1} parent=23 // pred_region
          %s199 = sand.u32 %s64, 1
          %s200 = scalar_lea.sflag [#allocation3], %s199
          %s201 = sand.u32 %s64, 1
          %s202 = smul.addr %s201, 16
          %s203 = scalar_lea.vmem [#allocation2], %s202
          %s205 = ssub.s32 256, 256
          %206 = vsyncadd %s200, %s205
          %s207 = smul.addr %s24, 4
          %s208 = smul.addr %s207, 64
          %s209 = scalar_lea.hbm %s1, %s208
          %s210 = sshll.u32 %s203, 4
          %s211 = int_to_ptr.vmem [resolvable:$true] %s210
          %216 = dma.hbm_to_vmem [thread:$0]  %s209, 256, %s211, %s200, 64, 64, 4
        $region28: #{tpu_custom_call.1} parent=23 // pred_fallthru
          _
        // Predicated region
        $region29: #{tpu_custom_call.1} parent=23 // pred_check
          %p217 = pneg %p100
        $region30: #{tpu_custom_call.1} parent=23 // pred_check_branch
          %219 = sbr.rel (%p217) target = $region32
        $region31: #{tpu_custom_call.1} parent=23 // pred_region
          %p220 = scmp.lt.s32.totalorder %s24, 1
          %s221 = scalar_select %p220, %s24, 1
          %s222 = scalar_lea.vmem %s2, %s221
        $region32: #{tpu_custom_call.1} parent=23 // pred_fallthru
          _
      $region24: #{tpu_custom_call.1} parent=5 // pred_fallthru
        _
      %p223 = scmp.le.s32.totalorder 1, %s16
      %p224 = scmp.lt.s32.totalorder %s16, 3
      %p225 = pnand %p223, %p224
      %p226 = pneg %p225
      // Predicated region
      $region33: #{tpu_custom_call.1} parent=5 // pred_check
        _
      $region34: #{tpu_custom_call.1} parent=5 // pred_check_branch
        %228 = sbr.rel (%p225) target = $region36
      $region35: #{tpu_custom_call.1} parent=5 // pred_region
        %s229 = ssub.s32 %s16, 1
        %s230 = sand.u32 %s67, 1
        %s231 = scalar_lea.sflag [#allocation3], %s230
        %s232 = sand.u32 %s67, 1
        %s233 = smul.addr %s232, 16
        %s234 = scalar_lea.vmem [#allocation2], %s233
        // Predicated region
        $region37: #{tpu_custom_call.1} parent=35 // pred_check
          %p235 = pneg %p80
        $region38: #{tpu_custom_call.1} parent=35 // pred_check_branch
          %237 = sbr.rel (%p235) target = $region40
        $region39: #{tpu_custom_call.1} parent=35 // pred_region
          %238 = dma.done %s231, 256
        $region40: #{tpu_custom_call.1} parent=35 // pred_fallthru
          _
        %s239 = smul.u32 2, %s25
        %p240 = scmp.lt.s32.totalorder %s239, 1
        %s241 = scalar_select %p240, %s239, 1
        %s242 = smul.addr %s241, 2
        %s243 = smul.addr %s242, 4
        %s244 = scalar_lea.vmem %s0, %s243
        %p245 = pneg %p54
        %p246 = pneg %p51
        %s247 = sand.u32 %s67, 1
        %s248 = scalar_lea.sflag [#allocation3], %s247
        %s249 = sand.u32 %s67, 1
        %s250 = smul.addr %s249, 16
        %s251 = scalar_lea.vmem [#allocation2], %s250
        %p252 = pneg %p80
        %p253 = pneg %p77
        %p254 = scmp.lt.s32.totalorder %s26, 1
        %s255 = scalar_select %p254, %s26, 1
        %s256 = scalar_lea.vmem %s2, %s255
        %p257 = pneg %p106
        %p258 = pneg %p103
        %p259 = scmp.lt.s32.totalorder %s25, 0
        %s260 = scalar_select %p259, %s25, 0
        %s261 = smul.addr %s260, 2
        %s262 = scalar_lea.vmem %s3, %s261
        %p263 = pneg %p132
        %p264 = pneg %p129
        %p265 = pneg %p160
        %p266 = pneg %p157
        %s267 = sand.u32 %s147, 1
        %s268 = scalar_lea.sflag [#allocation4], %s267
        %s269 = sand.u32 %s147, 1
        %s270 = smul.addr %s269, 8
        %s271 = scalar_lea.vmem [#allocation5], %s270
        %s272 = smul.u32 2, %s25
        %p273 = scmp.lt.s32.totalorder %s272, 1
        %s274 = scalar_select %p273, %s272, 1
        %s275 = smul.addr %s274, 2
        %s276 = smul.addr %s275, 4
        %s277 = scalar_lea.vmem %s0, %s276
        %s278 = smul.u32 2, %s25
        %p279 = scmp.lt.s32.totalorder %s26, 1
        %s280 = scalar_select %p279, %s26, 1
        %s281 = scalar_lea.vmem %s2, %s280
        %p282 = scmp.lt.s32.totalorder %s25, 0
        %s283 = scalar_select %p282, %s25, 0
        %s284 = smul.addr %s283, 2
        %s285 = scalar_lea.vmem %s3, %s284
        %s286 = smul.u32 2, %s25
        %v288 = vld [vmem:[%s277] sm:$0xf]
        %v289 = vld [vmem:[%s277 + $0x4] sm:$0x1]
        %v290 = vld [vmem:[%s277 + $0x8] sm:$0xf]
        %v291 = vld [vmem:[%s277 + $0xc] sm:$0x1]
        %v297 = vunpack.c.l.s4 1966171168
        %v298 = vunpack.c.0.s8 %v297
        %v299 = vlaneseq
        %v300 = vshrl.u32 %v299, 7
        %v301 = vsub.s32 %v298, %v300
        %v302 = vrot.slane %v288, %v301
        %v303 = vcombine.high %v302, %v302
        %v305 = vunpack.c.l.s4 1966171168
        %v306 = vunpack.c.0.s8 %v305
        %v307 = vlaneseq
        %v308 = vshrl.u32 %v307, 7
        %v309 = vsub.s32 %v306, %v308
        %v310 = vrot.slane %v302, %v309
        %v312 = vunpack.c.l.s4 1966171168
        %v313 = vunpack.c.0.s8 %v312
        %v314 = vlaneseq
        %v315 = vshrl.u32 %v314, 7
        %v316 = vsub.s32 %v313, %v315
        %v317 = vrot.slane %v303, %v316
        %v318 = vcombine.high %v310, %v310
        %v319 = vcombine.high %v317, %v317
        %v321 = vunpack.c.l.s4 1966171168
        %v322 = vunpack.c.0.s8 %v321
        %v323 = vlaneseq
        %v324 = vshrl.u32 %v323, 7
        %v325 = vsub.s32 %v322, %v324
        %v326 = vrot.slane %v289, %v325
        %v328 = vunpack.c.l.s4 1966171168
        %v329 = vunpack.c.0.s8 %v328
        %v330 = vlaneseq
        %v331 = vshrl.u32 %v330, 7
        %v332 = vsub.s32 %v329, %v331
        %v333 = vrot.slane %v326, %v332
        %v335 = vunpack.c.l.s4 1966171168
        %v336 = vunpack.c.0.s8 %v335
        %v337 = vlaneseq
        %v338 = vshrl.u32 %v337, 7
        %v339 = vsub.s32 %v336, %v338
        %v340 = vrot.slane %v290, %v339
        %v341 = vcombine.high %v340, %v340
        %v343 = vunpack.c.l.s4 1966171168
        %v344 = vunpack.c.0.s8 %v343
        %v345 = vlaneseq
        %v346 = vshrl.u32 %v345, 7
        %v347 = vsub.s32 %v344, %v346
        %v348 = vrot.slane %v340, %v347
        %v350 = vunpack.c.l.s4 1966171168
        %v351 = vunpack.c.0.s8 %v350
        %v352 = vlaneseq
        %v353 = vshrl.u32 %v352, 7
        %v354 = vsub.s32 %v351, %v353
        %v355 = vrot.slane %v341, %v354
        %v356 = vcombine.high %v348, %v348
        %v357 = vcombine.high %v355, %v355
        %v359 = vunpack.c.l.s4 1966171168
        %v360 = vunpack.c.0.s8 %v359
        %v361 = vlaneseq
        %v362 = vshrl.u32 %v361, 7
        %v363 = vsub.s32 %v360, %v362
        %v364 = vrot.slane %v291, %v363
        %v366 = vunpack.c.l.s4 1966171168
        %v367 = vunpack.c.0.s8 %v366
        %v368 = vlaneseq
        %v369 = vshrl.u32 %v368, 7
        %v370 = vsub.s32 %v367, %v369
        %v371 = vrot.slane %v364, %v370
        %v372 = vunpack.i.l.s16 %v310
        %v373 = vunpack.i.h.s16 %v310
        %v374 = vunpack.i.l.s16 %v317
        %v375 = vunpack.i.h.s16 %v317
        %v376 = vunpack.i.l.s16 %v318
        %v377 = vunpack.i.h.s16 %v318
        %v378 = vunpack.i.l.s16 %v319
        %v379 = vunpack.i.h.s16 %v319
        %v380 = vunpack.i.l.s16 %v333
        %v381 = vunpack.i.l.s16 %v348
        %v382 = vunpack.i.h.s16 %v348
        %v383 = vunpack.i.l.s16 %v355
        %v384 = vunpack.i.h.s16 %v355
        %v385 = vunpack.i.l.s16 %v356
        %v386 = vunpack.i.h.s16 %v356
        %v387 = vunpack.i.l.s16 %v357
        %v388 = vunpack.i.h.s16 %v357
        %v389 = vunpack.i.l.s16 %v371
        %v390 = vld [vmem:[%s234] sm:$0xf]
        %v391 = vld [vmem:[%s234 + $0x4] sm:$0xf]
        %v392 = vld [vmem:[%s234 + $0x8] sm:$0xf]
        %v393 = vld [vmem:[%s234 + $0xc] sm:$0xf]
        %v394 = vpack.i.b16 %v373, %v372
        %v395 = vpack.i.b16 %v375, %v374
        %v396 = vpack.i.b16 %v377, %v376
        %v397 = vpack.i.b16 %v379, %v378
        %v398 = vpack.i.b16 %v381, %v380
        %v399 = vpack.i.b16 %v383, %v382
        %v400 = vpack.i.b16 %v385, %v384
        %v401 = vpack.i.b16 %v387, %v386
        %v402 = vpack.i.b16 %v389, %v388
        %v403 = vcombine.low %v394, %v395
        %v404 = vcombine.low %v396, %v397
        %v405 = vcombine.low %v398, %v399
        %v406 = vcombine.low %v400, %v401
        %v408 = vunpack.c.l.s4 1966171168
        %v409 = vunpack.c.0.s8 %v408
        %v410 = vlaneseq
        %v411 = vshrl.u32 %v410, 7
        %v412 = vsub.s32 %v409, %v411
        %v413 = vrot.slane %v403, %v412
        %v415 = vunpack.c.l.s4 1966171168
        %v416 = vunpack.c.0.s8 %v415
        %v417 = vlaneseq
        %v418 = vshrl.u32 %v417, 7
        %v419 = vsub.s32 %v416, %v418
        %v420 = vrot.slane %v404, %v419
        %v422 = vunpack.c.l.s4 1966171168
        %v423 = vunpack.c.0.s8 %v422
        %v424 = vlaneseq
        %v425 = vshrl.u32 %v424, 7
        %v426 = vsub.s32 %v423, %v425
        %v427 = vrot.slane %v405, %v426
        %v429 = vunpack.c.l.s4 1966171168
        %v430 = vunpack.c.0.s8 %v429
        %v431 = vlaneseq
        %v432 = vshrl.u32 %v431, 7
        %v433 = vsub.s32 %v430, %v432
        %v434 = vrot.slane %v406, %v433
        %v435 = vcombine.low %v413, %v420
        %v436 = vcombine.low %v427, %v434
        %v438 = vunpack.c.l.s4 1966171168
        %v439 = vunpack.c.0.s8 %v438
        %v440 = vlaneseq
        %v441 = vshrl.u32 %v440, 7
        %v442 = vsub.s32 %v439, %v441
        %v443 = vrot.slane %v435, %v442
        %v445 = vunpack.c.l.s4 1966171168
        %v446 = vunpack.c.0.s8 %v445
        %v447 = vlaneseq
        %v448 = vshrl.u32 %v447, 7
        %v449 = vsub.s32 %v446, %v448
        %v450 = vrot.slane %v436, %v449
        %v451 = vcombine.low %v443, %v450
        %v453 = vunpack.c.l.s4 1966171168
        %v454 = vunpack.c.0.s8 %v453
        %v455 = vlaneseq
        %v456 = vshrl.u32 %v455, 7
        %v457 = vsub.s32 %v454, %v456
        %v458 = vrot.slane %v402, %v457
        %v460 = vunpack.c.l.s4 1966171168
        %v461 = vunpack.c.0.s8 %v460
        %v462 = vlaneseq
        %v463 = vshrl.u32 %v462, 7
        %v464 = vsub.s32 %v461, %v463
        %v465 = vrot.slane %v458, %v464
        %v470 = vunpack.c.l.b16 %v390
        %v471 = vunpack.c.l.b16 %v391
        %v472 = vunpack.c.l.b16 %v392
        %v473 = vunpack.c.l.b16 %v393
        %v474 = vpack.c.b16 %v471, %v470
        %v475 = vpack.c.b16 %v473, %v472
        %vm478 = vcmask 261120
        %v480 = vsel %vm478, %v451, 0
        %v483 = vsel %vm478, %v465, 0
        %485 = vmatprep.subr.bf16.mxu0 0
        %486 = vmatpush1.bf16.msra.mxu0 0
        %487 = vmatprep.subr.bf16.mxu0 0
        %488 = vmatpush1.bf16.msra.mxu0 0
        %489 = vmatprep.subr.bf16.mxu0 0
        %490 = vmatpush1.bf16.msra.mxu0 0
        %491 = vmatprep.subr.bf16.mxu0 0
        %492 = vmatpush1.bf16.msra.mxu0 0
        %493 = vmatprep.subr.bf16.mxu0 0
        %494 = vmatpush1.bf16.msra.mxu0 0
        %495 = vmatprep.subr.bf16.mxu0 0
        %496 = vmatpush1.bf16.msra.mxu0 0
        %497 = vmatprep.subr.bf16.mxu0 0
        %498 = vmatpush1.bf16.msra.mxu0 %v475
        %499 = vmatprep.subr.bf16.mxu0 0
        %500 = vmatpush1.bf16.msra.mxu0 %v474
        %501 = vmatprep.subr.bf16.mxu0 0
        %502 = vmatpush2.bf16.msra.mxu0 0
        %503 = vmatprep.subr.bf16.mxu0 0
        %504 = vmatpush2.bf16.msra.mxu0 0
        %505 = vmatprep.subr.bf16.mxu0 0
        %506 = vmatpush2.bf16.msra.mxu0 0
        %507 = vmatprep.subr.bf16.mxu0 0
        %508 = vmatpush2.bf16.msra.mxu0 0
        %509 = vmatprep.subr.bf16.mxu0 0
        %510 = vmatpush2.bf16.msra.mxu0 0
        %511 = vmatprep.subr.bf16.mxu0 0
        %512 = vmatpush2.bf16.msra.mxu0 0
        %513 = vmatprep.subr.bf16.mxu0 0
        %514 = vmatpush2.bf16.msra.mxu0 0
        %515 = vmatprep.subr.bf16.mxu0 0
        %516 = vmatpush2.bf16.msra.mxu0 0
        %517 = vmatprep.mubr.bf16.mxu0 0
        %518 = vmatmul.mubr.bf16.gmra.mxu0 %v480
        %v519 = vpop.f32.mrf.mxu0
        %v520 = vadd.f32 0.0, %v519
        %v521 = vpop.f32.mrf.mxu0
        %v522 = vpop.f32.mrf.mxu0
        %v523 = vadd.f32 0.0, %v522
        %v524 = vpop.f32.mrf.mxu0
        %525 = vmatprep.mubr.bf16.mxu0 0
        %526 = vmatmul.mubr.bf16.gmra.mxu0 %v483
        %v527 = vpop.f32.mrf.mxu0
        %v528 = vadd.f32 0.0, %v527
        %v529 = vpop.f32.mrf.mxu0
        %v530 = vpop.f32.mrf.mxu0
        %v531 = vpop.f32.mrf.mxu0
        %532 = vdwg.mxu0
        %v536 = vcombine.high %v520, %v520
        %v538 = vunpack.c.l.s4 1966171168
        %v539 = vunpack.c.0.s8 %v538
        %v540 = vlaneseq
        %v541 = vshrl.u32 %v540, 7
        %v542 = vsub.s32 %v539, %v541
        %v543 = vrot.slane %v520, %v542
        %v545 = vunpack.c.l.s4 1966171168
        %v546 = vunpack.c.0.s8 %v545
        %v547 = vlaneseq
        %v548 = vshrl.u32 %v547, 7
        %v549 = vsub.s32 %v546, %v548
        %v550 = vrot.slane %v536, %v549
        %v551 = vcombine.high %v543, %v543
        %v552 = vcombine.high %v550, %v550
        %v554 = vunpack.c.l.s4 1966171168
        %v555 = vunpack.c.0.s8 %v554
        %v556 = vlaneseq
        %v557 = vshrl.u32 %v556, 7
        %v558 = vsub.s32 %v555, %v557
        %v559 = vrot.slane %v543, %v558
        %v561 = vunpack.c.l.s4 1966171168
        %v562 = vunpack.c.0.s8 %v561
        %v563 = vlaneseq
        %v564 = vshrl.u32 %v563, 7
        %v565 = vsub.s32 %v562, %v564
        %v566 = vrot.slane %v550, %v565
        %v568 = vunpack.c.l.s4 1966171168
        %v569 = vunpack.c.0.s8 %v568
        %v570 = vlaneseq
        %v571 = vshrl.u32 %v570, 7
        %v572 = vsub.s32 %v569, %v571
        %v573 = vrot.slane %v551, %v572
        %v575 = vunpack.c.l.s4 1966171168
        %v576 = vunpack.c.0.s8 %v575
        %v577 = vlaneseq
        %v578 = vshrl.u32 %v577, 7
        %v579 = vsub.s32 %v576, %v578
        %v580 = vrot.slane %v552, %v579
        %v581 = vcombine.high %v559, %v559
        %v582 = vcombine.high %v566, %v566
        %v583 = vcombine.high %v573, %v573
        %v584 = vcombine.high %v580, %v580
        %v585 = vcombine.high %v523, %v523
        %v587 = vunpack.c.l.s4 1966171168
        %v588 = vunpack.c.0.s8 %v587
        %v589 = vlaneseq
        %v590 = vshrl.u32 %v589, 7
        %v591 = vsub.s32 %v588, %v590
        %v592 = vrot.slane %v523, %v591
        %v594 = vunpack.c.l.s4 1966171168
        %v595 = vunpack.c.0.s8 %v594
        %v596 = vlaneseq
        %v597 = vshrl.u32 %v596, 7
        %v598 = vsub.s32 %v595, %v597
        %v599 = vrot.slane %v585, %v598
        %v600 = vcombine.high %v592, %v592
        %v601 = vcombine.high %v599, %v599
        %v603 = vunpack.c.l.s4 1966171168
        %v604 = vunpack.c.0.s8 %v603
        %v605 = vlaneseq
        %v606 = vshrl.u32 %v605, 7
        %v607 = vsub.s32 %v604, %v606
        %v608 = vrot.slane %v592, %v607
        %v610 = vunpack.c.l.s4 1966171168
        %v611 = vunpack.c.0.s8 %v610
        %v612 = vlaneseq
        %v613 = vshrl.u32 %v612, 7
        %v614 = vsub.s32 %v611, %v613
        %v615 = vrot.slane %v599, %v614
        %v617 = vunpack.c.l.s4 1966171168
        %v618 = vunpack.c.0.s8 %v617
        %v619 = vlaneseq
        %v620 = vshrl.u32 %v619, 7
        %v621 = vsub.s32 %v618, %v620
        %v622 = vrot.slane %v600, %v621
        %v624 = vunpack.c.l.s4 1966171168
        %v625 = vunpack.c.0.s8 %v624
        %v626 = vlaneseq
        %v627 = vshrl.u32 %v626, 7
        %v628 = vsub.s32 %v625, %v627
        %v629 = vrot.slane %v601, %v628
        %v630 = vcombine.high %v608, %v608
        %v631 = vcombine.high %v615, %v615
        %v632 = vcombine.high %v622, %v622
        %v633 = vcombine.high %v629, %v629
        %v635 = vunpack.c.l.s4 1966171168
        %v636 = vunpack.c.0.s8 %v635
        %v637 = vlaneseq
        %v638 = vshrl.u32 %v637, 7
        %v639 = vsub.s32 %v636, %v638
        %v640 = vrot.slane %v528, %v639
        %v641 = vcombine.high %v640, %v640
        %v643 = vunpack.c.l.s4 1966171168
        %v644 = vunpack.c.0.s8 %v643
        %v645 = vlaneseq
        %v646 = vshrl.u32 %v645, 7
        %v647 = vsub.s32 %v644, %v646
        %v648 = vrot.slane %v640, %v647
        %v650 = vunpack.c.l.s4 1966171168
        %v651 = vunpack.c.0.s8 %v650
        %v652 = vlaneseq
        %v653 = vshrl.u32 %v652, 7
        %v654 = vsub.s32 %v651, %v653
        %v655 = vrot.slane %v641, %v654
        %672 = vrot.lane.b32.xlu0 %v573, 112
        %v673 = vpop.permute.xlu0 %672
        %674 = vrot.lane.b32.xlu0 %v581, 112
        %v675 = vpop.permute.xlu0 %674
        %676 = vrot.lane.b32.xlu0 %v583, 112
        %v677 = vpop.permute.xlu0 %676
        %678 = vrot.lane.b32.xlu0 %v566, 112
        %v679 = vpop.permute.xlu0 %678
        %680 = vrot.lane.b32.xlu0 %v580, 112
        %v681 = vpop.permute.xlu0 %680
        %682 = vrot.lane.b32.xlu0 %v582, 112
        %v683 = vpop.permute.xlu0 %682
        %684 = vrot.lane.b32.xlu0 %v584, 112
        %v685 = vpop.permute.xlu0 %684
        %686 = vrot.lane.b32.xlu0 %v608, 112
        %v687 = vpop.permute.xlu0 %686
        %688 = vrot.lane.b32.xlu0 %v630, 112
        %v689 = vpop.permute.xlu0 %688
        %690 = vrot.lane.b32.xlu0 %v632, 112
        %v691 = vpop.permute.xlu0 %690
        %692 = vrot.lane.b32.xlu0 %v615, 112
        %v693 = vpop.permute.xlu0 %692
        %694 = vrot.lane.b32.xlu0 %v629, 112
        %v695 = vpop.permute.xlu0 %694
        %696 = vrot.lane.b32.xlu0 %v631, 112
        %v697 = vpop.permute.xlu0 %696
        %698 = vrot.lane.b32.xlu0 %v633, 112
        %v699 = vpop.permute.xlu0 %698
        %700 = vrot.lane.b32.xlu0 %v648, 112
        %v701 = vpop.permute.xlu0 %700
        %702 = vrot.lane.b32.xlu0 %v655, 112
        %v703 = vpop.permute.xlu0 %702
        %v720 = vadd.f32 %v559, %v673
        %v721 = vadd.f32 %v573, %v675
        %v722 = vadd.f32 %v581, %v677
        %v723 = vadd.f32 %v583, %v679
        %v724 = vadd.f32 %v566, %v681
        %v725 = vadd.f32 %v580, %v683
        %v726 = vadd.f32 %v582, %v685
        %v727 = vadd.f32 %v584, %v687
        %v728 = vadd.f32 %v622, %v689
        %v729 = vadd.f32 %v630, %v691
        %v730 = vadd.f32 %v632, %v693
        %v731 = vadd.f32 %v615, %v695
        %v732 = vadd.f32 %v629, %v697
        %v733 = vadd.f32 %v631, %v699
        %v734 = vadd.f32 %v633, %v701
        %v735 = vadd.f32 %v648, %v703
        %v736 = vld [vmem:[%s281] sm:$0x1]
        %v738 = vlaneseq
        %v739 = vshrl.u32 %v738, 7
        %v740 = vsub.s32 0, %v739
        %v741 = vrot.slane %v736, %v740
        %v742 = vcombine.high %v741, %v741
        %v744 = vunpack.c.l.s4 1966171168
        %v745 = vunpack.c.0.s8 %v744
        %v746 = vlaneseq
        %v747 = vshrl.u32 %v746, 7
        %v748 = vsub.s32 %v745, %v747
        %v749 = vrot.slane %v741, %v748
        %v751 = vunpack.c.l.s4 1966171168
        %v752 = vunpack.c.0.s8 %v751
        %v753 = vlaneseq
        %v754 = vshrl.u32 %v753, 7
        %v755 = vsub.s32 %v752, %v754
        %v756 = vrot.slane %v742, %v755
        %v757 = vcombine.high %v749, %v749
        %v758 = vcombine.high %v756, %v756
        %v760 = vunpack.c.l.s4 1966171168
        %v761 = vunpack.c.0.s8 %v760
        %v762 = vlaneseq
        %v763 = vshrl.u32 %v762, 7
        %v764 = vsub.s32 %v761, %v763
        %v765 = vrot.slane %v749, %v764
        %v767 = vunpack.c.l.s4 1966171168
        %v768 = vunpack.c.0.s8 %v767
        %v769 = vlaneseq
        %v770 = vshrl.u32 %v769, 7
        %v771 = vsub.s32 %v768, %v770
        %v772 = vrot.slane %v756, %v771
        %v774 = vunpack.c.l.s4 1966171168
        %v775 = vunpack.c.0.s8 %v774
        %v776 = vlaneseq
        %v777 = vshrl.u32 %v776, 7
        %v778 = vsub.s32 %v775, %v777
        %v779 = vrot.slane %v757, %v778
        %v781 = vunpack.c.l.s4 1966171168
        %v782 = vunpack.c.0.s8 %v781
        %v783 = vlaneseq
        %v784 = vshrl.u32 %v783, 7
        %v785 = vsub.s32 %v782, %v784
        %v786 = vrot.slane %v758, %v785
        %v787 = vcombine.high %v765, %v765
        %v788 = vcombine.high %v772, %v772
        %v789 = vcombine.high %v779, %v779
        %v790 = vcombine.high %v786, %v786
        %v799 = vadd.f32 %v720, %v765
        %v800 = vadd.f32 %v721, %v779
        %v801 = vadd.f32 %v722, %v787
        %v802 = vadd.f32 %v723, %v789
        %v803 = vadd.f32 %v724, %v772
        %v804 = vadd.f32 %v725, %v786
        %v805 = vadd.f32 %v726, %v788
        %v806 = vadd.f32 %v727, %v790
        %v807 = vadd.f32 %v728, %v765
        %v808 = vadd.f32 %v729, %v779
        %v809 = vadd.f32 %v730, %v787
        %v810 = vadd.f32 %v731, %v789
        %v811 = vadd.f32 %v732, %v772
        %v812 = vadd.f32 %v733, %v786
        %v813 = vadd.f32 %v734, %v788
        %v814 = vadd.f32 %v735, %v790
        %v815 = vmul.f32 %v799, %v799
        %v816 = vmul.f32 %v800, %v800
        %v817 = vmul.f32 %v801, %v801
        %v818 = vmul.f32 %v802, %v802
        %v819 = vmul.f32 %v803, %v803
        %v820 = vmul.f32 %v804, %v804
        %v821 = vmul.f32 %v805, %v805
        %v822 = vmul.f32 %v806, %v806
        %v823 = vmul.f32 %v807, %v807
        %v824 = vmul.f32 %v808, %v808
        %v825 = vmul.f32 %v809, %v809
        %v826 = vmul.f32 %v810, %v810
        %v827 = vmul.f32 %v811, %v811
        %v828 = vmul.f32 %v812, %v812
        %v829 = vmul.f32 %v813, %v813
        %v830 = vmul.f32 %v814, %v814
        %v847 = vcombine.low %v815, %v816
        %v848 = vcombine.low %v817, %v818
        %v849 = vcombine.low %v819, %v820
        %v850 = vcombine.low %v821, %v822
        %v852 = vunpack.c.l.s4 1966171168
        %v853 = vunpack.c.0.s8 %v852
        %v854 = vlaneseq
        %v855 = vshrl.u32 %v854, 7
        %v856 = vsub.s32 %v853, %v855
        %v857 = vrot.slane %v847, %v856
        %v859 = vunpack.c.l.s4 1966171168
        %v860 = vunpack.c.0.s8 %v859
        %v861 = vlaneseq
        %v862 = vshrl.u32 %v861, 7
        %v863 = vsub.s32 %v860, %v862
        %v864 = vrot.slane %v848, %v863
        %v866 = vunpack.c.l.s4 1966171168
        %v867 = vunpack.c.0.s8 %v866
        %v868 = vlaneseq
        %v869 = vshrl.u32 %v868, 7
        %v870 = vsub.s32 %v867, %v869
        %v871 = vrot.slane %v849, %v870
        %v873 = vunpack.c.l.s4 1966171168
        %v874 = vunpack.c.0.s8 %v873
        %v875 = vlaneseq
        %v876 = vshrl.u32 %v875, 7
        %v877 = vsub.s32 %v874, %v876
        %v878 = vrot.slane %v850, %v877
        %v879 = vcombine.low %v857, %v864
        %v880 = vcombine.low %v871, %v878
        %v882 = vunpack.c.l.s4 1966171168
        %v883 = vunpack.c.0.s8 %v882
        %v884 = vlaneseq
        %v885 = vshrl.u32 %v884, 7
        %v886 = vsub.s32 %v883, %v885
        %v887 = vrot.slane %v879, %v886
        %v889 = vunpack.c.l.s4 1966171168
        %v890 = vunpack.c.0.s8 %v889
        %v891 = vlaneseq
        %v892 = vshrl.u32 %v891, 7
        %v893 = vsub.s32 %v890, %v892
        %v894 = vrot.slane %v880, %v893
        %v895 = vcombine.low %v887, %v894
        %v896 = vcombine.low %v823, %v824
        %v897 = vcombine.low %v825, %v826
        %v898 = vcombine.low %v827, %v828
        %v899 = vcombine.low %v829, %v830
        %v901 = vunpack.c.l.s4 1966171168
        %v902 = vunpack.c.0.s8 %v901
        %v903 = vlaneseq
        %v904 = vshrl.u32 %v903, 7
        %v905 = vsub.s32 %v902, %v904
        %v906 = vrot.slane %v896, %v905
        %v908 = vunpack.c.l.s4 1966171168
        %v909 = vunpack.c.0.s8 %v908
        %v910 = vlaneseq
        %v911 = vshrl.u32 %v910, 7
        %v912 = vsub.s32 %v909, %v911
        %v913 = vrot.slane %v897, %v912
        %v915 = vunpack.c.l.s4 1966171168
        %v916 = vunpack.c.0.s8 %v915
        %v917 = vlaneseq
        %v918 = vshrl.u32 %v917, 7
        %v919 = vsub.s32 %v916, %v918
        %v920 = vrot.slane %v898, %v919
        %v922 = vunpack.c.l.s4 1966171168
        %v923 = vunpack.c.0.s8 %v922
        %v924 = vlaneseq
        %v925 = vshrl.u32 %v924, 7
        %v926 = vsub.s32 %v923, %v925
        %v927 = vrot.slane %v899, %v926
        %v928 = vcombine.low %v906, %v913
        %v929 = vcombine.low %v920, %v927
        %v931 = vunpack.c.l.s4 1966171168
        %v932 = vunpack.c.0.s8 %v931
        %v933 = vlaneseq
        %v934 = vshrl.u32 %v933, 7
        %v935 = vsub.s32 %v932, %v934
        %v936 = vrot.slane %v928, %v935
        %v938 = vunpack.c.l.s4 1966171168
        %v939 = vunpack.c.0.s8 %v938
        %v940 = vlaneseq
        %v941 = vshrl.u32 %v940, 7
        %v942 = vsub.s32 %v939, %v941
        %v943 = vrot.slane %v929, %v942
        %v944 = vcombine.low %v936, %v943
        %vm947 = vcmask 130048
        %v948 = vsel %vm947, %v895, 0.0
        %949 = vadd.xlane.f32.xlu0 %v948
        %v950 = vpop.xlane.xlu0 %949
        %v951 = vsel %vm947, %v944, 0.0
        %952 = vadd.xlane.f32.xlu0 %v951
        %v953 = vpop.xlane.xlu0 %952
        %v954 = vrsqrt.pop %v950
        %v955 = vmul.f32 %v950, %v954
        %vm956 = vcmp.eq.f32.partialorder %v950, inf
        %v957 = vsel %vm956, %v950, %v955
        %vm958 = vcmp.eq.f32.partialorder %v950, 0.0
        %v959 = vand.u32 %v950, 2147483648
        %v960 = vsel %vm958, %v959, %v957
        %v961 = vrsqrt.pop %v953
        %v962 = vmul.f32 %v953, %v961
        %vm963 = vcmp.eq.f32.partialorder %v953, inf
        %v964 = vsel %vm963, %v953, %v962
        %vm965 = vcmp.eq.f32.partialorder %v953, 0.0
        %v966 = vand.u32 %v953, 2147483648
        %v967 = vsel %vm965, %v966, %v964
        %v968 = vld [vmem:[%s285] sm:$0x3]
        %v969 = vlaneseq
        %v970 = vshrl.u32 %v969, 7
        %v971 = vsub.s32 0, %v970
        %v972 = vrot.slane %v968, %v971
        %974 = vbcast.lane.b32.xlu0 %v972, 256
        %v975 = vpop.permute.xlu0 %974
        %v976 = vlaneseq
        %v977 = vshrl.u32 %v976, 7
        %v978 = vsub.s32 1, %v977
        %v979 = vrot.slane %v968, %v978
        %981 = vbcast.lane.b32.xlu0 %v979, 256
        %v982 = vpop.permute.xlu0 %981
        %v983 = vadd.f32 %v960, 1e-09
        %v984 = vadd.f32 %v967, 1e-09
        %v985 = vrcp.pop %v983
        %v986 = vrcp.pop %v984
        %v987 = vmul.f32 %v975, %v985
        %v988 = vmul.f32 %v982, %v986
        %v991 = vlaneseq
        %v992 = vshrl.u32 %v991, 7
        %v993 = vsub.s32 0, %v992
        %v994 = vrot.slane %v987, %v993
        %v995 = vlaneseq
        %v996 = vshrl.u32 %v995, 7
        %v997 = vsub.s32 1, %v996
        %v998 = vrot.slane %v987, %v997
        %v999 = vlaneseq
        %v1000 = vshrl.u32 %v999, 7
        %v1001 = vsub.s32 2, %v1000
        %v1002 = vrot.slane %v987, %v1001
        %v1003 = vlaneseq
        %v1004 = vshrl.u32 %v1003, 7
        %v1005 = vsub.s32 3, %v1004
        %v1006 = vrot.slane %v987, %v1005
        %v1007 = vlaneseq
        %v1008 = vshrl.u32 %v1007, 7
        %v1009 = vsub.s32 4, %v1008
        %v1010 = vrot.slane %v987, %v1009
        %v1011 = vlaneseq
        %v1012 = vshrl.u32 %v1011, 7
        %v1013 = vsub.s32 5, %v1012
        %v1014 = vrot.slane %v987, %v1013
        %v1015 = vlaneseq
        %v1016 = vshrl.u32 %v1015, 7
        %v1017 = vsub.s32 6, %v1016
        %v1018 = vrot.slane %v987, %v1017
        %v1019 = vlaneseq
        %v1020 = vshrl.u32 %v1019, 7
        %v1021 = vsub.s32 7, %v1020
        %v1022 = vrot.slane %v987, %v1021
        %v1023 = vlaneseq
        %v1024 = vshrl.u32 %v1023, 7
        %v1025 = vsub.s32 0, %v1024
        %v1026 = vrot.slane %v988, %v1025
        %v1027 = vlaneseq
        %v1028 = vshrl.u32 %v1027, 7
        %v1029 = vsub.s32 1, %v1028
        %v1030 = vrot.slane %v988, %v1029
        %v1031 = vlaneseq
        %v1032 = vshrl.u32 %v1031, 7
        %v1033 = vsub.s32 2, %v1032
        %v1034 = vrot.slane %v988, %v1033
        %v1035 = vlaneseq
        %v1036 = vshrl.u32 %v1035, 7
        %v1037 = vsub.s32 3, %v1036
        %v1038 = vrot.slane %v988, %v1037
        %v1039 = vlaneseq
        %v1040 = vshrl.u32 %v1039, 7
        %v1041 = vsub.s32 4, %v1040
        %v1042 = vrot.slane %v988, %v1041
        %v1043 = vlaneseq
        %v1044 = vshrl.u32 %v1043, 7
        %v1045 = vsub.s32 5, %v1044
        %v1046 = vrot.slane %v988, %v1045
        %v1047 = vlaneseq
        %v1048 = vshrl.u32 %v1047, 7
        %v1049 = vsub.s32 6, %v1048
        %v1050 = vrot.slane %v988, %v1049
        %v1051 = vlaneseq
        %v1052 = vshrl.u32 %v1051, 7
        %v1053 = vsub.s32 7, %v1052
        %v1054 = vrot.slane %v988, %v1053
        %v1071 = vmul.f32 %v799, %v994
        %v1072 = vmul.f32 %v800, %v998
        %v1073 = vmul.f32 %v801, %v1002
        %v1074 = vmul.f32 %v802, %v1006
        %v1075 = vmul.f32 %v803, %v1010
        %v1076 = vmul.f32 %v804, %v1014
        %v1077 = vmul.f32 %v805, %v1018
        %v1078 = vmul.f32 %v806, %v1022
        %v1079 = vmul.f32 %v807, %v1026
        %v1080 = vmul.f32 %v808, %v1030
        %v1081 = vmul.f32 %v809, %v1034
        %v1082 = vmul.f32 %v810, %v1038
        %v1083 = vmul.f32 %v811, %v1042
        %v1084 = vmul.f32 %v812, %v1046
        %v1085 = vmul.f32 %v813, %v1050
        %v1086 = vmul.f32 %v814, %v1054
        %v1103 = vcombine.low %v1071, %v1072
        %v1104 = vcombine.low %v1073, %v1074
        %v1105 = vcombine.low %v1075, %v1076
        %v1106 = vcombine.low %v1077, %v1078
        %v1108 = vunpack.c.l.s4 1966171168
        %v1109 = vunpack.c.0.s8 %v1108
        %v1110 = vlaneseq
        %v1111 = vshrl.u32 %v1110, 7
        %v1112 = vsub.s32 %v1109, %v1111
        %v1113 = vrot.slane %v1103, %v1112
        %v1115 = vunpack.c.l.s4 1966171168
        %v1116 = vunpack.c.0.s8 %v1115
        %v1117 = vlaneseq
        %v1118 = vshrl.u32 %v1117, 7
        %v1119 = vsub.s32 %v1116, %v1118
        %v1120 = vrot.slane %v1104, %v1119
        %v1122 = vunpack.c.l.s4 1966171168
        %v1123 = vunpack.c.0.s8 %v1122
        %v1124 = vlaneseq
        %v1125 = vshrl.u32 %v1124, 7
        %v1126 = vsub.s32 %v1123, %v1125
        %v1127 = vrot.slane %v1105, %v1126
        %v1129 = vunpack.c.l.s4 1966171168
        %v1130 = vunpack.c.0.s8 %v1129
        %v1131 = vlaneseq
        %v1132 = vshrl.u32 %v1131, 7
        %v1133 = vsub.s32 %v1130, %v1132
        %v1134 = vrot.slane %v1106, %v1133
        %v1135 = vcombine.low %v1113, %v1120
        %v1136 = vcombine.low %v1127, %v1134
        %v1138 = vunpack.c.l.s4 1966171168
        %v1139 = vunpack.c.0.s8 %v1138
        %v1140 = vlaneseq
        %v1141 = vshrl.u32 %v1140, 7
        %v1142 = vsub.s32 %v1139, %v1141
        %v1143 = vrot.slane %v1135, %v1142
        %v1145 = vunpack.c.l.s4 1966171168
        %v1146 = vunpack.c.0.s8 %v1145
        %v1147 = vlaneseq
        %v1148 = vshrl.u32 %v1147, 7
        %v1149 = vsub.s32 %v1146, %v1148
        %v1150 = vrot.slane %v1136, %v1149
        %v1151 = vcombine.low %v1143, %v1150
        %v1152 = vcombine.low %v1079, %v1080
        %v1153 = vcombine.low %v1081, %v1082
        %v1154 = vcombine.low %v1083, %v1084
        %v1155 = vcombine.low %v1085, %v1086
        %v1157 = vunpack.c.l.s4 1966171168
        %v1158 = vunpack.c.0.s8 %v1157
        %v1159 = vlaneseq
        %v1160 = vshrl.u32 %v1159, 7
        %v1161 = vsub.s32 %v1158, %v1160
        %v1162 = vrot.slane %v1152, %v1161
        %v1164 = vunpack.c.l.s4 1966171168
        %v1165 = vunpack.c.0.s8 %v1164
        %v1166 = vlaneseq
        %v1167 = vshrl.u32 %v1166, 7
        %v1168 = vsub.s32 %v1165, %v1167
        %v1169 = vrot.slane %v1153, %v1168
        %v1171 = vunpack.c.l.s4 1966171168
        %v1172 = vunpack.c.0.s8 %v1171
        %v1173 = vlaneseq
        %v1174 = vshrl.u32 %v1173, 7
        %v1175 = vsub.s32 %v1172, %v1174
        %v1176 = vrot.slane %v1154, %v1175
        %v1178 = vunpack.c.l.s4 1966171168
        %v1179 = vunpack.c.0.s8 %v1178
        %v1180 = vlaneseq
        %v1181 = vshrl.u32 %v1180, 7
        %v1182 = vsub.s32 %v1179, %v1181
        %v1183 = vrot.slane %v1155, %v1182
        %v1184 = vcombine.low %v1162, %v1169
        %v1185 = vcombine.low %v1176, %v1183
        %v1187 = vunpack.c.l.s4 1966171168
        %v1188 = vunpack.c.0.s8 %v1187
        %v1189 = vlaneseq
        %v1190 = vshrl.u32 %v1189, 7
        %v1191 = vsub.s32 %v1188, %v1190
        %v1192 = vrot.slane %v1184, %v1191
        %v1194 = vunpack.c.l.s4 1966171168
        %v1195 = vunpack.c.0.s8 %v1194
        %v1196 = vlaneseq
        %v1197 = vshrl.u32 %v1196, 7
        %v1198 = vsub.s32 %v1195, %v1197
        %v1199 = vrot.slane %v1185, %v1198
        %v1200 = vcombine.low %v1192, %v1199
        %v1203 = vpack.c.bf16 %v1151, %v1151
        %v1204 = vpack.c.bf16 %v1200, %v1200
        %vm1205 = vcmask 125952
        %1206 = vst.msk [vmem:[%s271] sm:$0xf] %vm1205, %v1203
        %1207 = vst.msk [vmem:[%s271 + $0x4] sm:$0xf] %vm1205, %v1204
        %s1208 = sand.u32 %s147, 1
        %s1209 = scalar_lea.sflag [#allocation4], %s1208
        %s1210 = sand.u32 %s147, 1
        %s1211 = smul.addr %s1210, 8
        %s1212 = scalar_lea.vmem [#allocation5], %s1211
        // Predicated region
        $region41: #{tpu_custom_call.1} parent=35 // pred_check
          %p1213 = pneg %p157
        $region42: #{tpu_custom_call.1} parent=35 // pred_check_branch
          %1215 = sbr.rel (%p1213) target = $region44
        $region43: #{tpu_custom_call.1} parent=35 // pred_region
          %s1216 = smul.u32 2, %s25
          %s1218 = ssub.s32 128, 128
          %1219 = vsyncadd %s1209, %s1218
          %s1220 = smul.addr %s26, 2
          %s1221 = sadd.s32 %s1216, %s1220
          %s1222 = smul.addr %s1221, 64
          %s1223 = scalar_lea.hbm %s4, %s1222
          %s1224 = sshll.u32 %s1212, 4
          %s1225 = int_to_ptr.vmem [resolvable:$true] %s1224
          %1230 = dma.vmem_to_hbm [thread:$0]  %s1225, 128, %s1223, %s1209, 64, 64, 4
        $region44: #{tpu_custom_call.1} parent=35 // pred_fallthru
          _
      $region36: #{tpu_custom_call.1} parent=5 // pred_fallthru
        _
      %p1231 = scmp.le.s32.totalorder 2, %s16
      // Predicated region
      $region45: #{tpu_custom_call.1} parent=5 // pred_check
        %p1232 = pneg %p1231
      $region46: #{tpu_custom_call.1} parent=5 // pred_check_branch
        %1234 = sbr.rel (%p1232) target = $region48
      $region47: #{tpu_custom_call.1} parent=5 // pred_region
        %s1235 = ssub.s32 %s16, 2
        // Predicated region
        $region49: #{tpu_custom_call.1} parent=47 // pred_check
          %p1236 = pneg %p163
        $region50: #{tpu_custom_call.1} parent=47 // pred_check_branch
          %1238 = sbr.rel (%p1236) target = $region52
        $region51: #{tpu_custom_call.1} parent=47 // pred_region
          %s1239 = sand.u32 %s148, 1
          %s1240 = scalar_lea.sflag [#allocation4], %s1239
          %s1241 = sand.u32 %s148, 1
          %s1242 = smul.addr %s1241, 8
          %s1243 = scalar_lea.vmem [#allocation5], %s1242
          %1244 = dma.done %s1240, 128
        $region52: #{tpu_custom_call.1} parent=47 // pred_fallthru
          _
      $region48: #{tpu_custom_call.1} parent=5 // pred_fallthru
        _
    $region6: #{tpu_custom_call.1} parent=1 // loop_footer
      %s20 = sadd.s32 1, %s16
    $region7: #{tpu_custom_call.1} parent=1 // loop_footer_branch
      %15 = sbr.rel target = $region3
    $region8: #{tpu_custom_call.1} parent=1 // loop_exit
      _
    %1245 = vsyncpa [#allocation3], 1
    %s1246 = scalar_lea.sflag [#allocation3], 1
    %1247 = vsyncpa %s1246, 1
    %1248 = vsyncpa [#allocation4], 1
    %s1249 = scalar_lea.sflag [#allocation4], 1
    %1250 = vsyncpa %s1249, 1

</llo_original>
